<compile_context>
chip_gen: v6e
topology: v6e:2x2x1
jax: 0.10.0
libtpu: 0.0.40
codegen_flags: <defaults>
</compile_context>

<pallas_src>
import jax
import jax.numpy as jnp
from jax.experimental import pallas as pl
from jax.experimental.pallas import tpu as pltpu


def _vmem_limit_bytes():
    """Explicit scoped-VMEM budget, capped against the chip's physical VMEM."""
    try:
        cap = pltpu.get_tpu_info().vmem_capacity_bytes
        return int(min(64 * 1024 * 1024, cap * 3 // 4))
    except Exception:
        return 32 * 1024 * 1024


def _pad_axis(x, axis, multiple):
    size = x.shape[axis]
    target = pl.cdiv(size, multiple) * multiple
    if target == size:
        return x
    pads = [(0, 0)] * x.ndim
    pads[axis] = (0, target - size)
    return jnp.pad(x, pads)


# --------------------------------------------------------------------------
# Dense (x @ W + b) kernel, tiled over rows (M) AND columns (N).
# --------------------------------------------------------------------------
def _dense_kernel(x_ref, w_ref, b_ref, o_ref):
    o_ref[...] = (
        jnp.dot(x_ref[...], w_ref[...], preferred_element_type=jnp.float32)
        + b_ref[...]
    ).astype(o_ref.dtype)


def dense_pallas(x, w, b, *, tm=256, tn=1024, out_dtype=jnp.float32):
    """x: (M, K) bf16, w: (K, N) bf16, b: (1, N) f32 -> (M, N) out_dtype."""
    M, K = x.shape
    N = w.shape[1]
    tm = min(tm, M)          # TODO(synk): use tm=128 on v5e (4x128 MXU) after a chip query
    tn = min(tn, N)
    xp = _pad_axis(x, 0, tm)                 # cdiv + padding, never one giant block
    wp = _pad_axis(w, 1, tn)
    bp = _pad_axis(b, 1, tn)
    Mp, Np = xp.shape[0], wp.shape[1]
    out = pl.pallas_call(
        _dense_kernel,
        out_shape=jax.ShapeDtypeStruct((Mp, Np), out_dtype),
        grid_spec=pltpu.PrefetchScalarGridSpec(
            num_scalar_prefetch=0,
            grid=(Mp // tm, Np // tn),
            in_specs=[
                pl.BlockSpec((tm, K), lambda i, j: (i, 0)),   # activation rows
                pl.BlockSpec((K, tn), lambda i, j: (0, j)),   # weight column block
                pl.BlockSpec((1, tn), lambda i, j: (0, j)),   # bias column block
            ],
            out_specs=pl.BlockSpec((tm, tn), lambda i, j: (i, j)),
        ),
        compiler_params=pltpu.CompilerParams(
            dimension_semantics=("parallel", "parallel"),
            vmem_limit_bytes=_vmem_limit_bytes(),
        ),
    )(xp, wp, bp)
    if (Mp, Np) != (M, N):
        out = out[:M, :N]
    return out


# --------------------------------------------------------------------------
# Output Linear over time-major hidden states; (T,B)->(B,T) reorder absorbed
# into the out-spec (per-tile transpose in VMEM, no standalone HBM pass).
# --------------------------------------------------------------------------
def _fc_time_major_kernel(h_ref, w_ref, b_ref, o_ref):
    # h_ref: (tt, B, H) bf16 ; w_ref: (H, tn) bf16 ; b_ref: (1, tn) f32
    # o_ref: (B, tt, tn) f32
    tt, bb, hh = h_ref.shape
    h = h_ref[...].reshape(tt * bb, hh)
    y = jnp.dot(h, w_ref[...], preferred_element_type=jnp.float32) + b_ref[...]
    o_ref[...] = jnp.transpose(y.reshape(tt, bb, -1), (1, 0, 2)).astype(o_ref.dtype)


def fc_time_major_pallas(hid_tm, w, b, *, tt=8, tn=1024):
    """hid_tm: (T, B, H) bf16, w: (H, V) bf16, b: (1, V) f32 -> (B, T, V) f32."""
    T, B, H = hid_tm.shape
    N = w.shape[1]
    tt = min(tt, T)
    if T % tt != 0:
        tt = T   # TODO(synk): pad T for ragged sequence lengths instead of clamping
    tn = min(tn, N)
    wp = _pad_axis(w, 1, tn)
    bp = _pad_axis(b, 1, tn)
    Np = wp.shape[1]
    out = pl.pallas_call(
        _fc_time_major_kernel,
        out_shape=jax.ShapeDtypeStruct((B, T, Np), jnp.float32),
        grid_spec=pltpu.PrefetchScalarGridSpec(
            num_scalar_prefetch=0,
            grid=(T // tt, Np // tn),
            in_specs=[
                pl.BlockSpec((tt, B, H), lambda t, n: (t, 0, 0)),
                pl.BlockSpec((H, tn), lambda t, n: (0, n)),
                pl.BlockSpec((1, tn), lambda t, n: (0, n)),
            ],
            out_specs=pl.BlockSpec((B, tt, tn), lambda t, n: (0, t, n)),
        ),
        compiler_params=pltpu.CompilerParams(
            dimension_semantics=("parallel", "parallel"),
            vmem_limit_bytes=_vmem_limit_bytes(),
        ),
    )(hid_tm, wp, bp)
    if Np != N:
        out = out[:, :, :N]
    return out


# --------------------------------------------------------------------------
# GRU recurrence: grid = (batch_blocks, T_chunks), h carried in VMEM scratch.
# --------------------------------------------------------------------------
def _gru_recurrent_kernel(gi_ref, whh_ref, bhh_n_ref, hid_ref, h_carry):
    """gi_ref  : (Tc, bt, 3H) f32   precomputed x @ W_ih^T + folded biases (r,z,n)
       whh_ref : (H, 3H)      bf16  hidden->gates weights
       bhh_n_ref: (1, H)      f32   hidden bias of the n gate (inside r*(.))
       hid_ref : (Tc, bt, H)  bf16  hidden-state chunk output
       h_carry : VMEM (bt, H) f32   carried hidden state across T chunks
    """
    @pl.when(pl.program_id(1) == 0)           # first T chunk of this batch block
    def _():
        h_carry[...] = jnp.zeros_like(h_carry)

    tc, bt, _ = gi_ref.shape
    H = whh_ref.shape[0]
    whh = whh_ref[...]                          # loaded once, reused every step
    bhh_n = bhh_n_ref[...]

    def step(t, h):
        gi = gi_ref[t]                          # (bt, 3H) dynamic leading-axis load
        gh = jnp.dot(h.astype(whh.dtype), whh,
                     preferred_element_type=jnp.float32)
        i_r, i_z, i_n = gi[:, :H], gi[:, H:2 * H], gi[:, 2 * H:]
        h_r, h_z, h_n = gh[:, :H], gh[:, H:2 * H], gh[:, 2 * H:]
        r = jax.nn.sigmoid(i_r + h_r)
        z = jax.nn.sigmoid(i_z + h_z)
        n = jnp.tanh(i_n + r * (h_n + bhh_n))
        h_new = (1.0 - z) * n + z * h
        hid_ref[t] = h_new.astype(hid_ref.dtype)   # bf16 store, f32 carry kept
        return h_new

    unroll = True if tc <= 8 else 4
    h_last = jax.lax.fori_loop(0, tc, step, h_carry[...], unroll=unroll)
    h_carry[...] = h_last


def gru_recurrent_pallas(gi_tm, w_hh_bf16, b_hh_n, *, tc=16, bt=None):
    """gi_tm: (T, B, 3H) f32 -> hidden states (T, B, H) bf16."""
    T, B, threeH = gi_tm.shape
    H = w_hh_bf16.shape[0]
    if bt is None:
        # Two batch blocks when alignment allows -> the 'parallel' axis shards
        # the recurrence across v7x's two TensorCores (no effect on v5e/v6e).
        bt = B // 2 if (B % 16 == 0) else B
    tc = min(tc, T)
    if T % tc != 0:
        tc = T   # TODO(synk): pad T to a multiple of tc for ragged sequence lengths
    return pl.pallas_call(
        _gru_recurrent_kernel,
        out_shape=jax.ShapeDtypeStruct((T, B, H), jnp.bfloat16),
        grid_spec=pltpu.PrefetchScalarGridSpec(
            num_scalar_prefetch=0,
            grid=(B // bt, T // tc),
            in_specs=[
                pl.BlockSpec((tc, bt, threeH), lambda b, t: (t, b, 0)),
                pl.BlockSpec((H, threeH), lambda b, t: (0, 0)),
                pl.BlockSpec((1, H), lambda b, t: (0, 0)),
            ],
            out_specs=pl.BlockSpec((tc, bt, H), lambda b, t: (t, b, 0)),
            scratch_shapes=[pltpu.VMEM((bt, H), jnp.float32)],
        ),
        compiler_params=pltpu.CompilerParams(
            dimension_semantics=("parallel", "arbitrary"),
            vmem_limit_bytes=_vmem_limit_bytes(),
        ),
    )(gi_tm, w_hh_bf16, b_hh_n)


# --------------------------------------------------------------------------
# Full forward pass (matches CustomRNN.forward)
# --------------------------------------------------------------------------
def custom_rnn_forward(params, features, captions):
    """features: (B, E) f32, captions: (B, L) int32 -> (B, L, V) f32."""
    B, E = features.shape
    H = params["w_hh_t"].shape[0]

    # bf16 at the producer: embedding table / features cast once, so the
    # gather+concat already emits bf16 activations (halves matmul DMA bytes).
    emb_table = params["embedding"].astype(jnp.bfloat16)
    cap_tm = jnp.transpose(captions[:, :-1])                       # (T-1, B) ints (tiny)
    cap_emb = jnp.take(emb_table, cap_tm, axis=0)                  # (T-1, B, E) bf16
    emb_tm = jnp.concatenate(
        [features.astype(jnp.bfloat16)[None], cap_emb], axis=0)    # (T, B, E) time-major
    T = emb_tm.shape[0]

    w_ih = params["w_ih_t"].astype(jnp.bfloat16)
    w_hh = params["w_hh_t"].astype(jnp.bfloat16)
    w_fc = params["w_fc_t"].astype(jnp.bfloat16)

    # Fold b_hh_r / b_hh_z into the hoisted input bias; only b_hh_n stays inside.
    b_hh = params["b_hh"]
    b_in = params["b_ih"] + jnp.concatenate(
        [b_hh[:, :2 * H], jnp.zeros((1, H), jnp.float32)], axis=1)
    b_hh_n = b_hh[:, 2 * H:]

    # (1) hoisted input->gates projection: one M=T*B matmul, gi kept in f32.
    gi = dense_pallas(emb_tm.reshape(T * B, E), w_ih, b_in,
                      tm=256, tn=1536)                             # (T*B, 3H) f32
    gi_tm = gi.reshape(T, B, 3 * H)                                # free reshape

    # (2) sequential GRU recurrence: only h @ W_hh on the critical path.
    hid_tm = gru_recurrent_pallas(gi_tm, w_hh, b_hh_n, tc=16)      # (T, B, H) bf16

    # (3) hoisted output Linear, vocab-tiled; batch-major reorder absorbed.
    logits = fc_time_major_pallas(hid_tm, w_fc, params["b_fc"],
                                  tt=8, tn=1024)                   # (B, T, V) f32
    return logits


# --------------------------------------------------------------------------
# Pure-JAX f32 reference (PyTorch GRU semantics) for a correctness check
# --------------------------------------------------------------------------
def _reference_forward(params, features, captions):
    emb_table = params["embedding"]
    cap_emb = jnp.take(emb_table, captions[:, :-1], axis=0)
    emb = jnp.concatenate([features[:, None, :], cap_emb], axis=1)   # (B, T, E)
    B, T, E = emb.shape
    H = params["w_hh_t"].shape[0]

    def step(h, x_t):
        gi = x_t @ params["w_ih_t"] + params["b_ih"]
        gh = h @ params["w_hh_t"] + params["b_hh"]
        i_r, i_z, i_n = gi[:, :H], gi[:, H:2 * H], gi[:, 2 * H:]
        h_r, h_z, h_n = gh[:, :H], gh[:, H:2 * H], gh[:, 2 * H:]
        r = jax.nn.sigmoid(i_r + h_r)
        z = jax.nn.sigmoid(i_z + h_z)
        n = jnp.tanh(i_n + r * h_n)
        h_new = (1.0 - z) * n + z * h
        return h_new, h_new

    h0 = jnp.zeros((B, H), jnp.float32)
    _, hs = jax.lax.scan(step, h0, jnp.transpose(emb, (1, 0, 2)))
    hs = jnp.transpose(hs, (1, 0, 2))                                # (B, T, H)
    return hs @ params["w_fc_t"] + params["b_fc"]


def init_params(key, embed_size, hidden_size, vocab_size):
    ks = jax.random.split(key, 7)
    scale = 0.1
    return {
        "embedding": scale * jax.random.normal(ks[0], (vocab_size, embed_size), jnp.float32),
        # PyTorch stores weight_ih_l0 as (3H, E); we keep transposes for x @ W.
        "w_ih_t": scale * jax.random.normal(ks[1], (embed_size, 3 * hidden_size), jnp.float32),
        "w_hh_t": scale * jax.random.normal(ks[2], (hidden_size, 3 * hidden_size), jnp.float32),
        "b_ih": scale * jax.random.normal(ks[3], (1, 3 * hidden_size), jnp.float32),
        "b_hh": scale * jax.random.normal(ks[4], (1, 3 * hidden_size), jnp.float32),
        "w_fc_t": scale * jax.random.normal(ks[5], (hidden_size, vocab_size), jnp.float32),
        "b_fc": scale * jax.random.normal(ks[6], (1, vocab_size), jnp.float32),
    }


if __name__ == "__main__":
    # Small but lane-friendly shapes: H multiple of 128 keeps gate slices and
    # hidden-state stores lane-dense; B=8 keeps sublane dims aligned.
    embed_size, hidden_size, vocab_size = 32, 128, 256
    batch, cap_len = 8, 8   # => sequence length T = 1 + (cap_len - 1) = 8

    key = jax.random.PRNGKey(0)
    k_params, k_feat, k_cap = jax.random.split(key, 3)

    params = init_params(k_params, embed_size, hidden_size, vocab_size)
    features = jax.random.normal(k_feat, (batch, embed_size), jnp.float32)
    captions = jax.random.randint(k_cap, (batch, cap_len), 0, vocab_size, jnp.int32)

    out = custom_rnn_forward(params, features, captions)
    out = jax.block_until_ready(out)

    ref = jax.block_until_ready(_reference_forward(params, features, captions))
    assert out.shape == (batch, cap_len, vocab_size), out.shape
    # bf16 MXU operands + bf16 hidden-state storage (f32 accumulate/carry) vs a
    # pure-f32 reference -> loosened tolerance.
    assert jnp.allclose(out, ref, atol=5e-2, rtol=5e-2), "mismatch vs reference"

    print("KERNEL_OK")
</pallas_src>

<mosaic_0001>
module attributes {stable_mosaic.version = 11 : i64} {
  func.func @_dense_kernel(%arg0: i32, %arg1: i32, %arg2: memref<64x32xbf16, #tpu.memory_space<vmem>>, %arg3: memref<32x384xbf16, #tpu.memory_space<vmem>>, %arg4: memref<1x384xf32, #tpu.memory_space<vmem>>, %arg5: memref<64x384xf32, #tpu.memory_space<vmem>>) attributes {dimension_semantics = [#tpu.dimension_semantics<parallel>, #tpu.dimension_semantics<parallel>], iteration_bounds = array<i64: 1, 1>, scalar_prefetch = 0 : i64, scratch_operands = 0 : i64, tpu.core_type = #tpu.core_type<tc>, window_params = [{transform_indices = @transform_0, window_bounds = array<i64: 64, 32>}, {transform_indices = @transform_1, window_bounds = array<i64: 32, 384>}, {transform_indices = @transform_2, window_bounds = array<i64: 1, 384>}, {transform_indices = @transform_3, window_bounds = array<i64: 64, 384>}]} {
    %c0 = arith.constant 0 : index
    %c0_0 = arith.constant 0 : index
    %0 = vector.load %arg2[%c0, %c0_0] : memref<64x32xbf16, #tpu.memory_space<vmem>>, vector<64x32xbf16>
    %c0_1 = arith.constant 0 : index
    %c0_2 = arith.constant 0 : index
    %1 = vector.load %arg3[%c0_1, %c0_2] : memref<32x384xbf16, #tpu.memory_space<vmem>>, vector<32x384xbf16>
    %cst = arith.constant dense<0.000000e+00> : vector<64x384xf32>
    %2 = tpu.matmul %0, %1, %cst {dimension_numbers = #tpu.dot_dimension_numbers<[1], [0], [0], [1], [0, 0, 1, 1], [], []>} : vector<64x32xbf16>, vector<32x384xbf16>, vector<64x384xf32> -> vector<64x384xf32>
    %c0_3 = arith.constant 0 : index
    %c0_4 = arith.constant 0 : index
    %3 = vector.load %arg4[%c0_3, %c0_4] : memref<1x384xf32, #tpu.memory_space<vmem>>, vector<1x384xf32>
    %4 = vector.broadcast %3 : vector<1x384xf32> to vector<64x384xf32>
    %5 = arith.addf %2, %4 : vector<64x384xf32>
    %c0_5 = arith.constant 0 : index
    %c0_6 = arith.constant 0 : index
    %6 = vector.load %arg5[%c0_5, %c0_6] : memref<64x384xf32, #tpu.memory_space<vmem>>, vector<64x384xf32>
    tpu.vector_store %arg5[%c0_5, %c0_6], %5 {strides = array<i32>} : memref<64x384xf32, #tpu.memory_space<vmem>>, vector<64x384xf32>,
    return
  }
  func.func @transform_0(%arg0: i32, %arg1: i32) -> (i32, i32) {
    %c0_i32 = arith.constant 0 : i32
    %c0_i32_0 = arith.constant 0 : i32
    return %arg0, %c0_i32 : i32, i32
  }
  func.func @transform_1(%arg0: i32, %arg1: i32) -> (i32, i32) {
    %c0_i32 = arith.constant 0 : i32
    %c0_i32_0 = arith.constant 0 : i32
    return %c0_i32, %arg1 : i32, i32
  }
  func.func @transform_2(%arg0: i32, %arg1: i32) -> (i32, i32) {
    %c0_i32 = arith.constant 0 : i32
    %c0_i32_0 = arith.constant 0 : i32
    return %c0_i32, %arg1 : i32, i32
  }
  func.func @transform_3(%arg0: i32, %arg1: i32) -> (i32, i32) {
    %c0_i32 = arith.constant 0 : i32
    return %arg0, %arg1 : i32, i32
  }
}

</mosaic_0001>

<llo_original>
// kernel: tpu_custom_call.1
$region0: #{tpu_custom_call.1}
  #allocation0 [shape = 'u32[]', space=smem, size = 0x4, offset = 0x4, fixed_abs, tag = 'smem constant byte address 0x4 - core index']
  #allocation1 [shape = 'u32[144,128]{1,0:T(1,128)}', space=vmem, size = 0x12000, scoped, tag = 'internal scratch']
  %s0 = inlined_call_operand.vmem [shape: bf16[64,32], index: 0, kind: input, shape index: {}]
  %s1 = inlined_call_operand.vmem [shape: bf16[32,384], index: 1, kind: input, shape index: {}]
  %s2 = inlined_call_operand.vmem [shape: f32[1,384], index: 2, kind: input, shape index: {}]
  %s3 = inlined_call_operand.hbm [shape: f32[64,384], index: 3, kind: output, shape index: {}]
  %s4 = sld [smem:[#allocation0]]
  $region22: #{tpu_custom_call.1} parent=0
    _
  %s6 = ssub.s32 1, %s4
  %s7 = scalar_select 0, %s6, %s4
  $region1: #{tpu_custom_call.1} parent=0
    #allocation2 [shape = 'u8[98304]{0}', space=vmem, size = 0x18000, scoped, tag = 'output window, operand 0, single buffered']
    #allocation3 [shape = 's32[1]{0}', space=sflag, size = 0x4, scoped, tag = 'scoped memory for tpu_custom_call.1']
    %8 = vsyncpa [#allocation3], 0
    // Predicated region
    $region2: #{tpu_custom_call.1} parent=1 // pred_check
      _
    $region3: #{tpu_custom_call.1} parent=1 // pred_check_branch
      %10 = sbr.rel (0) target = $region5
    $region4: #{tpu_custom_call.1} parent=1 // pred_region
      _
    $region5: #{tpu_custom_call.1} parent=1 // pred_fallthru
      _
    // Predicated region
    $region6: #{tpu_custom_call.1} parent=1 // pred_check
      _
    $region7: #{tpu_custom_call.1} parent=1 // pred_check_branch
      %12 = sbr.rel (0) target = $region9
    $region8: #{tpu_custom_call.1} parent=1 // pred_region
      _
    $region9: #{tpu_custom_call.1} parent=1 // pred_fallthru
      _
    // Predicated region
    $region10: #{tpu_custom_call.1} parent=1 // pred_check
      _
    $region11: #{tpu_custom_call.1} parent=1 // pred_check_branch
      %14 = sbr.rel (0) target = $region13
    $region12: #{tpu_custom_call.1} parent=1 // pred_region
      _
    $region13: #{tpu_custom_call.1} parent=1 // pred_fallthru
      _
    %v16 = vld [vmem:[%s0] sm:$0xf]
    %v17 = vld [vmem:[%s0 + $0x4] sm:$0xf]
    %v18 = vld [vmem:[%s0 + $0x8] sm:$0xf]
    %v19 = vld [vmem:[%s0 + $0xc] sm:$0xf]
    %v20 = vld [vmem:[%s0 + $0x10] sm:$0xf]
    %v21 = vld [vmem:[%s0 + $0x14] sm:$0xf]
    %v22 = vld [vmem:[%s0 + $0x18] sm:$0xf]
    %v23 = vld [vmem:[%s0 + $0x1c] sm:$0xf]
    %v24 = vld [vmem:[%s1] sm:$0xff]
    %v25 = vld [vmem:[%s1 + $0x8] sm:$0xf]
    %v26 = vld [vmem:[%s1 + $0xc] sm:$0xff]
    %v27 = vld [vmem:[%s1 + $0x14] sm:$0xf]
    %v28 = vld [vmem:[%s1 + $0x18] sm:$0xff]
    %v29 = vld [vmem:[%s1 + $0x20] sm:$0xf]
    %v30 = vld [vmem:[%s1 + $0x24] sm:$0xff]
    %v31 = vld [vmem:[%s1 + $0x2c] sm:$0xf]
    %v32 = vld [vmem:[%s2] sm:$0x7]
    %v34 = vlaneseq
    %v35 = vshrl.u32 %v34, 7
    %v36 = vsub.s32 0, %v35
    %v37 = vrot.slane %v32, %v36
    %v38 = vlaneseq
    %v39 = vshrl.u32 %v38, 7
    %v40 = vsub.s32 1, %v39
    %v41 = vrot.slane %v32, %v40
    %v42 = vlaneseq
    %v43 = vshrl.u32 %v42, 7
    %v44 = vsub.s32 2, %v43
    %v45 = vrot.slane %v32, %v44
    %v57 = vunpack.c.l.b16 %v16
    %v58 = vunpack.c.l.b16 %v17
    %v59 = vunpack.c.l.b16 %v18
    %v60 = vunpack.c.l.b16 %v19
    %v61 = vunpack.c.l.b16 %v20
    %v62 = vunpack.c.l.b16 %v21
    %v63 = vunpack.c.l.b16 %v22
    %v64 = vunpack.c.l.b16 %v23
    %v65 = vpack.c.b16 %v58, %v57
    %v66 = vpack.c.b16 %v60, %v59
    %v67 = vpack.c.b16 %v62, %v61
    %v68 = vpack.c.b16 %v64, %v63
    %v77 = vunpack.c.l.b16 %v24
    %v78 = vunpack.c.h.b16 %v24
    %v79 = vunpack.c.l.b16 %v25
    %v80 = vunpack.c.l.b16 %v26
    %v81 = vunpack.c.h.b16 %v26
    %v82 = vunpack.c.l.b16 %v27
    %v83 = vunpack.c.l.b16 %v28
    %v84 = vunpack.c.h.b16 %v28
    %v85 = vunpack.c.l.b16 %v29
    %v86 = vunpack.c.l.b16 %v30
    %v87 = vunpack.c.h.b16 %v30
    %v88 = vunpack.c.l.b16 %v31
    %v89 = vpack.c.b16 %v80, %v77
    %v90 = vpack.c.b16 %v81, %v78
    %v91 = vpack.c.b16 %v82, %v79
    %v92 = vpack.c.b16 %v86, %v83
    %v93 = vpack.c.b16 %v87, %v84
    %v94 = vpack.c.b16 %v88, %v85
    %vm101 = vcmask 261120
    %v103 = vsel %vm101, %v65, 0
    %v106 = vsel %vm101, %v66, 0
    %v109 = vsel %vm101, %v67, 0
    %v112 = vsel %vm101, %v68, 0
    %114 = vmatprep.subr.bf16.mxu0 0
    %115 = vmatpush1.bf16.msra.mxu0 0
    %116 = vmatprep.subr.bf16.mxu0 0
    %117 = vmatpush1.bf16.msra.mxu0 0
    %118 = vmatprep.subr.bf16.mxu0 0
    %119 = vmatpush1.bf16.msra.mxu0 0
    %120 = vmatprep.subr.bf16.mxu0 0
    %121 = vmatpush1.bf16.msra.mxu0 0
    %122 = vmatprep.subr.bf16.mxu0 0
    %123 = vmatpush1.bf16.msra.mxu0 0
    %124 = vmatprep.subr.bf16.mxu0 0
    %125 = vmatpush1.bf16.msra.mxu0 0
    %126 = vmatprep.subr.bf16.mxu0 %v93
    %127 = vmatpush1.bf16.msra.mxu0 %v92
    %128 = vmatprep.subr.bf16.mxu0 %v90
    %129 = vmatpush1.bf16.msra.mxu0 %v89
    %130 = vmatprep.subr.bf16.mxu0 0
    %131 = vmatpush2.bf16.msra.mxu0 0
    %132 = vmatprep.subr.bf16.mxu0 0
    %133 = vmatpush2.bf16.msra.mxu0 0
    %134 = vmatprep.subr.bf16.mxu0 0
    %135 = vmatpush2.bf16.msra.mxu0 0
    %136 = vmatprep.subr.bf16.mxu0 0
    %137 = vmatpush2.bf16.msra.mxu0 0
    %138 = vmatprep.subr.bf16.mxu0 0
    %139 = vmatpush2.bf16.msra.mxu0 0
    %140 = vmatprep.subr.bf16.mxu0 0
    %141 = vmatpush2.bf16.msra.mxu0 0
    %142 = vmatprep.subr.bf16.mxu0 0
    %143 = vmatpush2.bf16.msra.mxu0 0
    %144 = vmatprep.subr.bf16.mxu0 0
    %145 = vmatpush2.bf16.msra.mxu0 0
    %146 = vmatprep.mubr.bf16.mxu0 0
    %147 = vmatmul.mubr.bf16.gmra.mxu0 %v103
    %v148 = vpop.f32.mrf.mxu0
    %v149 = vadd.f32 %v37, %v148
    %v150 = vpop.f32.mrf.mxu0
    %v151 = vadd.f32 %v41, %v150
    %v152 = vpop.f32.mrf.mxu0
    %v153 = vadd.f32 %v37, %v152
    %v154 = vpop.f32.mrf.mxu0
    %v155 = vadd.f32 %v41, %v154
    %156 = vmatprep.mubr.bf16.mxu0 0
    %157 = vmatmul.mubr.bf16.gmra.mxu0 %v106
    %v158 = vpop.f32.mrf.mxu0
    %v159 = vadd.f32 %v37, %v158
    %v160 = vpop.f32.mrf.mxu0
    %v161 = vadd.f32 %v41, %v160
    %v162 = vpop.f32.mrf.mxu0
    %v163 = vadd.f32 %v37, %v162
    %v164 = vpop.f32.mrf.mxu0
    %v165 = vadd.f32 %v41, %v164
    %166 = vmatprep.mubr.bf16.mxu0 0
    %167 = vmatmul.mubr.bf16.gmra.mxu0 %v109
    %v168 = vpop.f32.mrf.mxu0
    %v169 = vadd.f32 %v37, %v168
    %v170 = vpop.f32.mrf.mxu0
    %v171 = vadd.f32 %v41, %v170
    %v172 = vpop.f32.mrf.mxu0
    %v173 = vadd.f32 %v37, %v172
    %v174 = vpop.f32.mrf.mxu0
    %v175 = vadd.f32 %v41, %v174
    %176 = vmatprep.mubr.bf16.mxu0 0
    %177 = vmatmul.mubr.bf16.gmra.mxu0 %v112
    %v178 = vpop.f32.mrf.mxu0
    %v179 = vadd.f32 %v37, %v178
    %v180 = vpop.f32.mrf.mxu0
    %v181 = vadd.f32 %v41, %v180
    %v182 = vpop.f32.mrf.mxu0
    %v183 = vadd.f32 %v37, %v182
    %v184 = vpop.f32.mrf.mxu0
    %v185 = vadd.f32 %v41, %v184
    %186 = vdwg.mxu0
    %187 = vmatprep.subr.bf16.mxu0 0
    %188 = vmatpush1.bf16.msra.mxu0 0
    %189 = vmatprep.subr.bf16.mxu0 0
    %190 = vmatpush1.bf16.msra.mxu0 0
    %191 = vmatprep.subr.bf16.mxu0 0
    %192 = vmatpush1.bf16.msra.mxu0 0
    %193 = vmatprep.subr.bf16.mxu0 0
    %194 = vmatpush1.bf16.msra.mxu0 0
    %195 = vmatprep.subr.bf16.mxu0 0
    %196 = vmatpush1.bf16.msra.mxu0 0
    %197 = vmatprep.subr.bf16.mxu0 0
    %198 = vmatpush1.bf16.msra.mxu0 0
    %199 = vmatprep.subr.bf16.mxu0 0
    %200 = vmatpush1.bf16.msra.mxu0 %v94
    %201 = vmatprep.subr.bf16.mxu0 0
    %202 = vmatpush1.bf16.msra.mxu0 %v91
    %203 = vmatprep.subr.bf16.mxu0 0
    %204 = vmatpush2.bf16.msra.mxu0 0
    %205 = vmatprep.subr.bf16.mxu0 0
    %206 = vmatpush2.bf16.msra.mxu0 0
    %207 = vmatprep.subr.bf16.mxu0 0
    %208 = vmatpush2.bf16.msra.mxu0 0
    %209 = vmatprep.subr.bf16.mxu0 0
    %210 = vmatpush2.bf16.msra.mxu0 0
    %211 = vmatprep.subr.bf16.mxu0 0
    %212 = vmatpush2.bf16.msra.mxu0 0
    %213 = vmatprep.subr.bf16.mxu0 0
    %214 = vmatpush2.bf16.msra.mxu0 0
    %215 = vmatprep.subr.bf16.mxu0 0
    %216 = vmatpush2.bf16.msra.mxu0 0
    %217 = vmatprep.subr.bf16.mxu0 0
    %218 = vmatpush2.bf16.msra.mxu0 0
    %219 = vmatprep.mubr.bf16.mxu0 0
    %220 = vmatmul.mubr.bf16.gmra.mxu0 %v103
    %v221 = vpop.f32.mrf.mxu0
    %v222 = vadd.f32 %v45, %v221
    %v223 = vpop.f32.mrf.mxu0
    %v224 = vpop.f32.mrf.mxu0
    %v225 = vadd.f32 %v45, %v224
    %v226 = vpop.f32.mrf.mxu0
    %227 = vmatprep.mubr.bf16.mxu0 0
    %228 = vmatmul.mubr.bf16.gmra.mxu0 %v106
    %v229 = vpop.f32.mrf.mxu0
    %v230 = vadd.f32 %v45, %v229
    %v231 = vpop.f32.mrf.mxu0
    %v232 = vpop.f32.mrf.mxu0
    %v233 = vadd.f32 %v45, %v232
    %v234 = vpop.f32.mrf.mxu0
    %235 = vmatprep.mubr.bf16.mxu0 0
    %236 = vmatmul.mubr.bf16.gmra.mxu0 %v109
    %v237 = vpop.f32.mrf.mxu0
    %v238 = vadd.f32 %v45, %v237
    %v239 = vpop.f32.mrf.mxu0
    %v240 = vpop.f32.mrf.mxu0
    %v241 = vadd.f32 %v45, %v240
    %v242 = vpop.f32.mrf.mxu0
    %243 = vmatprep.mubr.bf16.mxu0 0
    %244 = vmatmul.mubr.bf16.gmra.mxu0 %v112
    %v245 = vpop.f32.mrf.mxu0
    %v246 = vadd.f32 %v45, %v245
    %v247 = vpop.f32.mrf.mxu0
    %v248 = vpop.f32.mrf.mxu0
    %v249 = vadd.f32 %v45, %v248
    %v250 = vpop.f32.mrf.mxu0
    %251 = vdwg.mxu0
    %252 = vst [vmem:[#allocation2] sm:$0xff] %v149
    %253 = vst [vmem:[#allocation2 + $0x8] sm:$0xff] %v151
    %254 = vst [vmem:[#allocation2 + $0x10] sm:$0xff] %v222
    %255 = vst [vmem:[#allocation2 + $0x18] sm:$0xff] %v153
    %256 = vst [vmem:[#allocation2 + $0x20] sm:$0xff] %v155
    %257 = vst [vmem:[#allocation2 + $0x28] sm:$0xff] %v225
    %258 = vst [vmem:[#allocation2 + $0x30] sm:$0xff] %v159
    %259 = vst [vmem:[#allocation2 + $0x38] sm:$0xff] %v161
    %260 = vst [vmem:[#allocation2 + $0x40] sm:$0xff] %v230
    %261 = vst [vmem:[#allocation2 + $0x48] sm:$0xff] %v163
    %262 = vst [vmem:[#allocation2 + $0x50] sm:$0xff] %v165
    %263 = vst [vmem:[#allocation2 + $0x58] sm:$0xff] %v233
    %264 = vst [vmem:[#allocation2 + $0x60] sm:$0xff] %v169
    %265 = vst [vmem:[#allocation2 + $0x68] sm:$0xff] %v171
    %266 = vst [vmem:[#allocation2 + $0x70] sm:$0xff] %v238
    %267 = vst [vmem:[#allocation2 + $0x78] sm:$0xff] %v173
    %268 = vst [vmem:[#allocation2 + $0x80] sm:$0xff] %v175
    %269 = vst [vmem:[#allocation2 + $0x88] sm:$0xff] %v241
    %270 = vst [vmem:[#allocation2 + $0x90] sm:$0xff] %v179
    %271 = vst [vmem:[#allocation2 + $0x98] sm:$0xff] %v181
    %272 = vst [vmem:[#allocation2 + $0xa0] sm:$0xff] %v246
    %273 = vst [vmem:[#allocation2 + $0xa8] sm:$0xff] %v183
    %274 = vst [vmem:[#allocation2 + $0xb0] sm:$0xff] %v185
    %275 = vst [vmem:[#allocation2 + $0xb8] sm:$0xff] %v249
    // Predicated region
    $region14: #{tpu_custom_call.1} parent=1 // pred_check
      _
    $region15: #{tpu_custom_call.1} parent=1 // pred_check_branch
      %277 = sbr.rel (0) target = $region17
    $region16: #{tpu_custom_call.1} parent=1 // pred_region
      %s279 = ssub.s32 3072, 3072
      %280 = vsyncadd [#allocation3], %s279
      %s281 = sshll.u32 [#allocation2], 4
      %s282 = int_to_ptr.vmem [resolvable:$true] %s281
      %287 = dma.vmem_to_hbm [thread:$0]  %s282, 3072, %s3, [#allocation3], 384, 384, 24
    $region17: #{tpu_custom_call.1} parent=1 // pred_fallthru
      _
    // Predicated region
    $region18: #{tpu_custom_call.1} parent=1 // pred_check
      _
    $region19: #{tpu_custom_call.1} parent=1 // pred_check_branch
      %289 = sbr.rel (0) target = $region21
    $region20: #{tpu_custom_call.1} parent=1 // pred_region
      %290 = dma.done [#allocation3], 3072
    $region21: #{tpu_custom_call.1} parent=1 // pred_fallthru
      _
    %291 = vsyncpa [#allocation3], 1

</llo_original>
